<compile_context>
chip_gen: v7x
topology: tpu7x:2x2x1
jax: 0.10.0
libtpu: 0.0.40
codegen_flags: <defaults>
</compile_context>

<pallas_src>
import jax
import jax.numpy as jnp
from jax import lax
from jax.experimental import pallas as pl
from jax.experimental.pallas import tpu as pltpu

EPS = 1e-5
LANE = 128


def _residual_block_kernel(
    x_ref,
    w1_ref, g1_ref, be1_ref,
    w2_ref, g2_ref, be2_ref,
    w3_ref, b3_ref,
    o_ref,
):
    x = x_ref[...].astype(jnp.float32)          # [B, Dp], residual kept in f32
    inv_b = 1.0 / x.shape[0]                    # static batch size

    def mm(a, w_ref):
        # bf16 operands -> MXU-native on v5e/v6e/v7x, f32 accumulation.
        return jnp.dot(a.astype(jnp.bfloat16),
                       w_ref[...].astype(jnp.bfloat16),
                       preferred_element_type=jnp.float32)

    def bn_relu(h, g_ref, be_ref):
        # One-pass stats (sum and sum of squares together), biased variance.
        mean = jnp.sum(h, axis=0, keepdims=True) * inv_b
        ex2 = jnp.sum(h * h, axis=0, keepdims=True) * inv_b
        var = ex2 - mean * mean
        # BN folded to a single FMA; rsqrt goes to the EUP slot.
        scale = g_ref[...] * lax.rsqrt(var + EPS)
        shift = be_ref[...] - mean * scale
        return jnp.maximum(h * scale + shift, 0.0)   # fused ReLU

    # fc1 (bias omitted: exactly cancelled by bn1 mean subtraction) -> bn1 -> relu
    h = bn_relu(mm(x, w1_ref), g1_ref, be1_ref)
    # fc2 (bias omitted: cancelled by bn2) -> bn2 -> relu
    h = bn_relu(mm(h, w2_ref), g2_ref, be2_ref)
    # fc3 + bias + residual
    o_ref[...] = (mm(h, w3_ref) + b3_ref[...] + x).astype(o_ref.dtype)


def _round_up(n, m):
    return ((n + m - 1) // m) * m


def _pad2d(a, rows, cols):
    pr, pc = rows - a.shape[0], cols - a.shape[1]
    if pr == 0 and pc == 0:
        return a
    return jnp.pad(a, ((0, pr), (0, pc)))


def residual_block(x, params):
    """x: [B, input_dim] float32; params: dict from init_params (PyTorch-equivalent)."""
    B, D = x.shape
    H1 = params["w1"].shape[1]
    H2 = params["w2"].shape[1]
    Dp, H1p, H2p = (_round_up(d, LANE) for d in (D, H1, H2))

    # NOTE: batch dim is NOT padded (BN statistics must be over the true batch).
    x_p = _pad2d(x, B, Dp)
    w1 = _pad2d(params["w1"], Dp, H1p)
    g1 = _pad2d(params["g1"], 1, H1p)
    be1 = _pad2d(params["be1"], 1, H1p)
    w2 = _pad2d(params["w2"], H1p, H2p)
    g2 = _pad2d(params["g2"], 1, H2p)
    be2 = _pad2d(params["be2"], 1, H2p)
    w3 = _pad2d(params["w3"], H2p, Dp)
    b3 = _pad2d(params["b3"], 1, Dp)

    def full_spec(shape):
        # whole array as a single block (everything comfortably fits VMEM)
        return pl.BlockSpec(shape, lambda: (0,) * len(shape))

    # Donate x's HBM buffer to the output only when x_p is a fresh padded temporary
    # (so the caller's original x is never invalidated).
    io_alias = {0: 0} if Dp != D else {}

    out_p = pl.pallas_call(
        _residual_block_kernel,
        out_shape=jax.ShapeDtypeStruct((B, Dp), x.dtype),
        grid=(),
        in_specs=[
            full_spec((B, Dp)),
            full_spec((Dp, H1p)), full_spec((1, H1p)), full_spec((1, H1p)),
            full_spec((H1p, H2p)), full_spec((1, H2p)), full_spec((1, H2p)),
            full_spec((H2p, Dp)), full_spec((1, Dp)),
        ],
        out_specs=full_spec((B, Dp)),
        input_output_aliases=io_alias,
        compiler_params=pltpu.CompilerParams(),
    )(x_p, w1, g1, be1, w2, g2, be2, w3, b3)

    return out_p[:, :D] if Dp != D else out_p


def init_params(key, input_dim, hidden1_dim, hidden2_dim):
    """Deterministic synthetic parameter init (shapes match nn.Linear / BatchNorm1d).

    b1 / b2 are kept here for module fidelity (and used by the reference), but the
    kernel omits them: they are mathematically cancelled by the training-mode BN.
    """
    ks = jax.random.split(key, 6)

    def linear(kw, kb, fan_in, fan_out):
        bound = 1.0 / jnp.sqrt(fan_in)
        # stored as (in, out) so kernel does x @ W
        w = jax.random.uniform(kw, (fan_in, fan_out), jnp.float32, -bound, bound)
        b = jax.random.uniform(kb, (1, fan_out), jnp.float32, -bound, bound)
        return w, b

    w1, b1 = linear(ks[0], ks[1], input_dim, hidden1_dim)
    w2, b2 = linear(ks[2], ks[3], hidden1_dim, hidden2_dim)
    w3, b3 = linear(ks[4], ks[5], hidden2_dim, input_dim)

    return {
        "w1": w1, "b1": b1,
        "g1": jnp.ones((1, hidden1_dim), jnp.float32),
        "be1": jnp.zeros((1, hidden1_dim), jnp.float32),
        "w2": w2, "b2": b2,
        "g2": jnp.ones((1, hidden2_dim), jnp.float32),
        "be2": jnp.zeros((1, hidden2_dim), jnp.float32),
        "w3": w3, "b3": b3,
    }


def residual_block_ref(x, p):
    """Pure-JAX f32 reference mirroring the PyTorch forward (training-mode BN, with biases)."""
    def bn(h, g, be):
        m = jnp.mean(h, axis=0, keepdims=True)
        v = jnp.mean((h - m) ** 2, axis=0, keepdims=True)
        return (h - m) / jnp.sqrt(v + EPS) * g + be

    h = jax.nn.relu(bn(x @ p["w1"] + p["b1"], p["g1"], p["be1"]))
    h = jax.nn.relu(bn(h @ p["w2"] + p["b2"], p["g2"], p["be2"]))
    return h @ p["w3"] + p["b3"] + x


if __name__ == "__main__":
    B, INPUT_DIM, H1, H2 = 8, 32, 64, 48

    key = jax.random.PRNGKey(0)
    kx, kp = jax.random.split(key)
    x = jax.random.normal(kx, (B, INPUT_DIM), jnp.float32)
    params = init_params(kp, INPUT_DIM, H1, H2)

    out = jax.block_until_ready(residual_block(x, params))
    ref = residual_block_ref(x, params)

    assert out.shape == (B, INPUT_DIM)
    # bf16 MXU operands (f32 accumulation) -> compare against the pure-f32 reference
    # with a correspondingly relaxed tolerance.
    max_err = float(jnp.max(jnp.abs(out - ref)))
    assert jnp.allclose(out, ref, atol=1e-1, rtol=1e-1), (
        f"mismatch vs reference: max abs err = {max_err}")

    print("KERNEL_OK")
</pallas_src>

<mosaic_0001>
module attributes {stable_mosaic.version = 11 : i64} {
  func.func @_residual_block_kernel(%arg0: memref<8x128xf32, #tpu.memory_space<vmem>>, %arg1: memref<128x128xf32, #tpu.memory_space<vmem>>, %arg2: memref<1x128xf32, #tpu.memory_space<vmem>>, %arg3: memref<1x128xf32, #tpu.memory_space<vmem>>, %arg4: memref<128x128xf32, #tpu.memory_space<vmem>>, %arg5: memref<1x128xf32, #tpu.memory_space<vmem>>, %arg6: memref<1x128xf32, #tpu.memory_space<vmem>>, %arg7: memref<128x128xf32, #tpu.memory_space<vmem>>, %arg8: memref<1x128xf32, #tpu.memory_space<vmem>>, %arg9: memref<8x128xf32, #tpu.memory_space<vmem>>) attributes {dimension_semantics = [], scalar_prefetch = 0 : i64, scratch_operands = 0 : i64, tpu.core_type = #tpu.core_type<tc>} {
    %c0 = arith.constant 0 : index
    %c0_0 = arith.constant 0 : index
    %0 = vector.load %arg0[%c0, %c0_0] : memref<8x128xf32, #tpu.memory_space<vmem>>, vector<8x128xf32>
    %1 = arith.truncf %0 : vector<8x128xf32> to vector<8x128xbf16>
    %c0_1 = arith.constant 0 : index
    %c0_2 = arith.constant 0 : index
    %2 = vector.load %arg1[%c0_1, %c0_2] : memref<128x128xf32, #tpu.memory_space<vmem>>, vector<128x128xf32>
    %3 = arith.truncf %2 : vector<128x128xf32> to vector<128x128xbf16>
    %cst = arith.constant dense<0.000000e+00> : vector<8x128xf32>
    %4 = tpu.matmul %1, %3, %cst {dimension_numbers = #tpu.dot_dimension_numbers<[1], [0], [0], [1], [0, 0, 1, 1], [], []>} : vector<8x128xbf16>, vector<128x128xbf16>, vector<8x128xf32> -> vector<8x128xf32>
    %cst_3 = arith.constant dense<0.000000e+00> : vector<128xf32>
    %5 = vector.multi_reduction <add>, %4, %cst_3 [0] : vector<8x128xf32> to vector<128xf32>
    %6 = vector.shape_cast %5 : vector<128xf32> to vector<1x128xf32>
    %cst_4 = arith.constant 1.250000e-01 : f32
    %7 = vector.broadcast %cst_4 : f32 to vector<1x128xf32>
    %8 = arith.mulf %6, %7 : vector<1x128xf32>
    %9 = arith.mulf %4, %4 : vector<8x128xf32>
    %cst_5 = arith.constant dense<0.000000e+00> : vector<128xf32>
    %10 = vector.multi_reduction <add>, %9, %cst_5 [0] : vector<8x128xf32> to vector<128xf32>
    %11 = vector.shape_cast %10 : vector<128xf32> to vector<1x128xf32>
    %cst_6 = arith.constant 1.250000e-01 : f32
    %12 = vector.broadcast %cst_6 : f32 to vector<1x128xf32>
    %13 = arith.mulf %11, %12 : vector<1x128xf32>
    %14 = arith.mulf %8, %8 : vector<1x128xf32>
    %15 = arith.subf %13, %14 : vector<1x128xf32>
    %c0_7 = arith.constant 0 : index
    %c0_8 = arith.constant 0 : index
    %16 = vector.load %arg2[%c0_7, %c0_8] : memref<1x128xf32, #tpu.memory_space<vmem>>, vector<1x128xf32>
    %cst_9 = arith.constant 9.99999974E-6 : f32
    %17 = vector.broadcast %cst_9 : f32 to vector<1x128xf32>
    %18 = arith.addf %15, %17 : vector<1x128xf32>
    %19 = math.rsqrt %18 : vector<1x128xf32>
    %20 = arith.mulf %16, %19 : vector<1x128xf32>
    %c0_10 = arith.constant 0 : index
    %c0_11 = arith.constant 0 : index
    %21 = vector.load %arg3[%c0_10, %c0_11] : memref<1x128xf32, #tpu.memory_space<vmem>>, vector<1x128xf32>
    %22 = arith.mulf %8, %20 : vector<1x128xf32>
    %23 = arith.subf %21, %22 : vector<1x128xf32>
    %24 = vector.broadcast %20 : vector<1x128xf32> to vector<8x128xf32>
    %25 = arith.mulf %4, %24 : vector<8x128xf32>
    %26 = vector.broadcast %23 : vector<1x128xf32> to vector<8x128xf32>
    %27 = arith.addf %25, %26 : vector<8x128xf32>
    %cst_12 = arith.constant 0.000000e+00 : f32
    %28 = vector.broadcast %cst_12 : f32 to vector<8x128xf32>
    %29 = arith.maximumf %27, %28 : vector<8x128xf32>
    %30 = arith.truncf %29 : vector<8x128xf32> to vector<8x128xbf16>
    %c0_13 = arith.constant 0 : index
    %c0_14 = arith.constant 0 : index
    %31 = vector.load %arg4[%c0_13, %c0_14] : memref<128x128xf32, #tpu.memory_space<vmem>>, vector<128x128xf32>
    %32 = arith.truncf %31 : vector<128x128xf32> to vector<128x128xbf16>
    %cst_15 = arith.constant dense<0.000000e+00> : vector<8x128xf32>
    %33 = tpu.matmul %30, %32, %cst_15 {dimension_numbers = #tpu.dot_dimension_numbers<[1], [0], [0], [1], [0, 0, 1, 1], [], []>} : vector<8x128xbf16>, vector<128x128xbf16>, vector<8x128xf32> -> vector<8x128xf32>
    %cst_16 = arith.constant dense<0.000000e+00> : vector<128xf32>
    %34 = vector.multi_reduction <add>, %33, %cst_16 [0] : vector<8x128xf32> to vector<128xf32>
    %35 = vector.shape_cast %34 : vector<128xf32> to vector<1x128xf32>
    %cst_17 = arith.constant 1.250000e-01 : f32
    %36 = vector.broadcast %cst_17 : f32 to vector<1x128xf32>
    %37 = arith.mulf %35, %36 : vector<1x128xf32>
    %38 = arith.mulf %33, %33 : vector<8x128xf32>
    %cst_18 = arith.constant dense<0.000000e+00> : vector<128xf32>
    %39 = vector.multi_reduction <add>, %38, %cst_18 [0] : vector<8x128xf32> to vector<128xf32>
    %40 = vector.shape_cast %39 : vector<128xf32> to vector<1x128xf32>
    %cst_19 = arith.constant 1.250000e-01 : f32
    %41 = vector.broadcast %cst_19 : f32 to vector<1x128xf32>
    %42 = arith.mulf %40, %41 : vector<1x128xf32>
    %43 = arith.mulf %37, %37 : vector<1x128xf32>
    %44 = arith.subf %42, %43 : vector<1x128xf32>
    %c0_20 = arith.constant 0 : index
    %c0_21 = arith.constant 0 : index
    %45 = vector.load %arg5[%c0_20, %c0_21] : memref<1x128xf32, #tpu.memory_space<vmem>>, vector<1x128xf32>
    %cst_22 = arith.constant 9.99999974E-6 : f32
    %46 = vector.broadcast %cst_22 : f32 to vector<1x128xf32>
    %47 = arith.addf %44, %46 : vector<1x128xf32>
    %48 = math.rsqrt %47 : vector<1x128xf32>
    %49 = arith.mulf %45, %48 : vector<1x128xf32>
    %c0_23 = arith.constant 0 : index
    %c0_24 = arith.constant 0 : index
    %50 = vector.load %arg6[%c0_23, %c0_24] : memref<1x128xf32, #tpu.memory_space<vmem>>, vector<1x128xf32>
    %51 = arith.mulf %37, %49 : vector<1x128xf32>
    %52 = arith.subf %50, %51 : vector<1x128xf32>
    %53 = vector.broadcast %49 : vector<1x128xf32> to vector<8x128xf32>
    %54 = arith.mulf %33, %53 : vector<8x128xf32>
    %55 = vector.broadcast %52 : vector<1x128xf32> to vector<8x128xf32>
    %56 = arith.addf %54, %55 : vector<8x128xf32>
    %cst_25 = arith.constant 0.000000e+00 : f32
    %57 = vector.broadcast %cst_25 : f32 to vector<8x128xf32>
    %58 = arith.maximumf %56, %57 : vector<8x128xf32>
    %59 = arith.truncf %58 : vector<8x128xf32> to vector<8x128xbf16>
    %c0_26 = arith.constant 0 : index
    %c0_27 = arith.constant 0 : index
    %60 = vector.load %arg7[%c0_26, %c0_27] : memref<128x128xf32, #tpu.memory_space<vmem>>, vector<128x128xf32>
    %61 = arith.truncf %60 : vector<128x128xf32> to vector<128x128xbf16>
    %cst_28 = arith.constant dense<0.000000e+00> : vector<8x128xf32>
    %62 = tpu.matmul %59, %61, %cst_28 {dimension_numbers = #tpu.dot_dimension_numbers<[1], [0], [0], [1], [0, 0, 1, 1], [], []>} : vector<8x128xbf16>, vector<128x128xbf16>, vector<8x128xf32> -> vector<8x128xf32>
    %c0_29 = arith.constant 0 : index
    %c0_30 = arith.constant 0 : index
    %63 = vector.load %arg8[%c0_29, %c0_30] : memref<1x128xf32, #tpu.memory_space<vmem>>, vector<1x128xf32>
    %64 = vector.broadcast %63 : vector<1x128xf32> to vector<8x128xf32>
    %65 = arith.addf %62, %64 : vector<8x128xf32>
    %66 = arith.addf %65, %0 : vector<8x128xf32>
    %c0_31 = arith.constant 0 : index
    %c0_32 = arith.constant 0 : index
    %67 = vector.load %arg9[%c0_31, %c0_32] : memref<8x128xf32, #tpu.memory_space<vmem>>, vector<8x128xf32>
    tpu.vector_store %arg9[%c0_31, %c0_32], %66 {strides = array<i32>} : memref<8x128xf32, #tpu.memory_space<vmem>>, vector<8x128xf32>,
    return
  }
}

</mosaic_0001>

<llo_original>
// kernel: tpu_custom_call.1
$region0: #{tpu_custom_call.1}
  #allocation0 [shape = 'u32[]', space=smem, size = 0x4, offset = 0x4, fixed_abs, tag = 'smem constant byte address 0x4 - core index']
  #allocation1 [shape = 'u32[144,128]{1,0:T(1,128)}', space=vmem, size = 0x12000, scoped, tag = 'internal scratch']
  %s0 = inlined_call_operand.hbm [shape: f32[8,128], index: 0, kind: input, shape index: {}, may-alias: {0,9}]
  %s1 = inlined_call_operand.hbm [shape: f32[128,128], index: 1, kind: input, shape index: {}]
  %s2 = inlined_call_operand.vmem [shape: f32[1,128], index: 2, kind: input, shape index: {}]
  %s3 = inlined_call_operand.vmem [shape: f32[1,128], index: 3, kind: input, shape index: {}]
  %s4 = inlined_call_operand.hbm [shape: f32[128,128], index: 4, kind: input, shape index: {}]
  %s5 = inlined_call_operand.vmem [shape: f32[1,128], index: 5, kind: input, shape index: {}]
  %s6 = inlined_call_operand.vmem [shape: f32[1,128], index: 6, kind: input, shape index: {}]
  %s7 = inlined_call_operand.hbm [shape: f32[128,128], index: 7, kind: input, shape index: {}]
  %s8 = inlined_call_operand.vmem [shape: f32[1,128], index: 8, kind: input, shape index: {}]
  %s9 = inlined_call_operand.hbm [shape: f32[8,128], index: 9, kind: output, shape index: {}, may-alias: {0,9}]
  %s10 = sld [smem:[#allocation0]]
  $region62: #{tpu_custom_call.1} parent=0
    _
  %s12 = ssub.s32 1, %s10
  %s13 = scalar_select 0, %s12, %s10
  $region1: #{tpu_custom_call.1} parent=0
    #allocation2 [shape = 'u8[4096]{0}', space=vmem, size = 0x1000, scoped, tag = 'input window, operand 0, single buffered']
    #allocation3 [shape = 's32[1]{0}', space=sflag, size = 0x4, scoped, tag = 'scoped memory for tpu_custom_call.1']
    #allocation4 [shape = 's32[1]{0}', space=sflag, size = 0x4, scoped, tag = 'scoped memory for tpu_custom_call.1']
    #allocation5 [shape = 'u8[65536]{0}', space=vmem, size = 0x10000, scoped, tag = 'input window, operand 1, single buffered']
    #allocation6 [shape = 's32[1]{0}', space=sflag, size = 0x4, scoped, tag = 'scoped memory for tpu_custom_call.1']
    #allocation7 [shape = 'u8[65536]{0}', space=vmem, size = 0x10000, scoped, tag = 'input window, operand 4, single buffered']
    #allocation8 [shape = 'u8[65536]{0}', space=vmem, size = 0x10000, scoped, tag = 'input window, operand 7, single buffered']
    #allocation9 [shape = 's32[1]{0}', space=sflag, size = 0x4, scoped, tag = 'scoped memory for tpu_custom_call.1']
    #allocation10 [shape = 'u8[4096]{0}', space=vmem, size = 0x1000, scoped, tag = 'output window, operand 0, single buffered']
    %14 = vsyncpa [#allocation3], 0
    %15 = vsyncpa [#allocation6], 0
    %16 = vsyncpa [#allocation9], 0
    %17 = vsyncpa [#allocation4], 0
    // Predicated region
    $region2: #{tpu_custom_call.1} parent=1 // pred_check
      _
    $region3: #{tpu_custom_call.1} parent=1 // pred_check_branch
      %19 = sbr.rel (0) target = $region5
    $region4: #{tpu_custom_call.1} parent=1 // pred_region
      %s21 = ssub.s32 128, 128
      %22 = vsyncadd [#allocation3], %s21
      %s24 = sshll.u32 [#allocation2], 4
      %s25 = int_to_ptr.vmem [resolvable:$true] %s24
      %27 = dma.hbm_to_vmem [thread:$0]  %s0, 128, %s25, [#allocation3]
    $region5: #{tpu_custom_call.1} parent=1 // pred_fallthru
      _
    // Predicated region
    $region6: #{tpu_custom_call.1} parent=1 // pred_check
      _
    $region7: #{tpu_custom_call.1} parent=1 // pred_check_branch
      %29 = sbr.rel (0) target = $region9
    $region8: #{tpu_custom_call.1} parent=1 // pred_region
      %s31 = ssub.s32 2048, 2048
      %32 = vsyncadd [#allocation6], %s31
      %s33 = sshll.u32 [#allocation5], 4
      %s34 = int_to_ptr.vmem [resolvable:$true] %s33
      %39 = dma.hbm_to_vmem [thread:$0]  %s1, 2048, %s34, [#allocation6], 128, 128, 8
    $region9: #{tpu_custom_call.1} parent=1 // pred_fallthru
      _
    // Predicated region
    $region10: #{tpu_custom_call.1} parent=1 // pred_check
      _
    $region11: #{tpu_custom_call.1} parent=1 // pred_check_branch
      %41 = sbr.rel (0) target = $region13
    $region12: #{tpu_custom_call.1} parent=1 // pred_region
      _
    $region13: #{tpu_custom_call.1} parent=1 // pred_fallthru
      _
    // Predicated region
    $region14: #{tpu_custom_call.1} parent=1 // pred_check
      _
    $region15: #{tpu_custom_call.1} parent=1 // pred_check_branch
      %43 = sbr.rel (0) target = $region17
    $region16: #{tpu_custom_call.1} parent=1 // pred_region
      _
    $region17: #{tpu_custom_call.1} parent=1 // pred_fallthru
      _
    // Predicated region
    $region18: #{tpu_custom_call.1} parent=1 // pred_check
      _
    $region19: #{tpu_custom_call.1} parent=1 // pred_check_branch
      %45 = sbr.rel (0) target = $region21
    $region20: #{tpu_custom_call.1} parent=1 // pred_region
      %s47 = ssub.s32 2048, 2048
      %48 = vsyncadd [#allocation6], %s47
      %s49 = sshll.u32 [#allocation7], 4
      %s50 = int_to_ptr.vmem [resolvable:$true] %s49
      %55 = dma.hbm_to_vmem [thread:$0]  %s4, 2048, %s50, [#allocation6], 128, 128, 8
    $region21: #{tpu_custom_call.1} parent=1 // pred_fallthru
      _
    // Predicated region
    $region22: #{tpu_custom_call.1} parent=1 // pred_check
      _
    $region23: #{tpu_custom_call.1} parent=1 // pred_check_branch
      %57 = sbr.rel (0) target = $region25
    $region24: #{tpu_custom_call.1} parent=1 // pred_region
      _
    $region25: #{tpu_custom_call.1} parent=1 // pred_fallthru
      _
    // Predicated region
    $region26: #{tpu_custom_call.1} parent=1 // pred_check
      _
    $region27: #{tpu_custom_call.1} parent=1 // pred_check_branch
      %59 = sbr.rel (0) target = $region29
    $region28: #{tpu_custom_call.1} parent=1 // pred_region
      _
    $region29: #{tpu_custom_call.1} parent=1 // pred_fallthru
      _
    // Predicated region
    $region30: #{tpu_custom_call.1} parent=1 // pred_check
      _
    $region31: #{tpu_custom_call.1} parent=1 // pred_check_branch
      %61 = sbr.rel (0) target = $region33
    $region32: #{tpu_custom_call.1} parent=1 // pred_region
      %s63 = ssub.s32 2048, 2048
      %64 = vsyncadd [#allocation9], %s63
      %s65 = sshll.u32 [#allocation8], 4
      %s66 = int_to_ptr.vmem [resolvable:$true] %s65
      %71 = dma.hbm_to_vmem [thread:$0]  %s7, 2048, %s66, [#allocation9], 128, 128, 8
    $region33: #{tpu_custom_call.1} parent=1 // pred_fallthru
      _
    // Predicated region
    $region34: #{tpu_custom_call.1} parent=1 // pred_check
      _
    $region35: #{tpu_custom_call.1} parent=1 // pred_check_branch
      %73 = sbr.rel (0) target = $region37
    $region36: #{tpu_custom_call.1} parent=1 // pred_region
      _
    $region37: #{tpu_custom_call.1} parent=1 // pred_fallthru
      _
    // Predicated region
    $region38: #{tpu_custom_call.1} parent=1 // pred_check
      _
    $region39: #{tpu_custom_call.1} parent=1 // pred_check_branch
      %75 = sbr.rel (0) target = $region41
    $region40: #{tpu_custom_call.1} parent=1 // pred_region
      %76 = dma.done [#allocation3], 128
    $region41: #{tpu_custom_call.1} parent=1 // pred_fallthru
      _
    // Predicated region
    $region42: #{tpu_custom_call.1} parent=1 // pred_check
      _
    $region43: #{tpu_custom_call.1} parent=1 // pred_check_branch
      %78 = sbr.rel (0) target = $region45
    $region44: #{tpu_custom_call.1} parent=1 // pred_region
      %79 = dma.done [#allocation6], 2048
    $region45: #{tpu_custom_call.1} parent=1 // pred_fallthru
      _
    // Predicated region
    $region46: #{tpu_custom_call.1} parent=1 // pred_check
      _
    $region47: #{tpu_custom_call.1} parent=1 // pred_check_branch
      %81 = sbr.rel (0) target = $region49
    $region48: #{tpu_custom_call.1} parent=1 // pred_region
      %82 = dma.done [#allocation6], 2048
    $region49: #{tpu_custom_call.1} parent=1 // pred_fallthru
      _
    // Predicated region
    $region50: #{tpu_custom_call.1} parent=1 // pred_check
      _
    $region51: #{tpu_custom_call.1} parent=1 // pred_check_branch
      %84 = sbr.rel (0) target = $region53
    $region52: #{tpu_custom_call.1} parent=1 // pred_region
      %85 = dma.done [#allocation9], 2048
    $region53: #{tpu_custom_call.1} parent=1 // pred_fallthru
      _
    %v87 = vld [vmem:[#allocation2] sm:$0xff]
    %v88 = vpack.c.bf16 %v87, %v87
    %v89 = vld [vmem:[#allocation5] sm:$0xff]
    %v90 = vld [vmem:[#allocation5 + $0x8] sm:$0xff]
    %v91 = vld [vmem:[#allocation5 + $0x10] sm:$0xff]
    %v92 = vld [vmem:[#allocation5 + $0x18] sm:$0xff]
    %v93 = vld [vmem:[#allocation5 + $0x20] sm:$0xff]
    %v94 = vld [vmem:[#allocation5 + $0x28] sm:$0xff]
    %v95 = vld [vmem:[#allocation5 + $0x30] sm:$0xff]
    %v96 = vld [vmem:[#allocation5 + $0x38] sm:$0xff]
    %v97 = vld [vmem:[#allocation5 + $0x40] sm:$0xff]
    %v98 = vld [vmem:[#allocation5 + $0x48] sm:$0xff]
    %v99 = vld [vmem:[#allocation5 + $0x50] sm:$0xff]
    %v100 = vld [vmem:[#allocation5 + $0x58] sm:$0xff]
    %v101 = vld [vmem:[#allocation5 + $0x60] sm:$0xff]
    %v102 = vld [vmem:[#allocation5 + $0x68] sm:$0xff]
    %v103 = vld [vmem:[#allocation5 + $0x70] sm:$0xff]
    %v104 = vld [vmem:[#allocation5 + $0x78] sm:$0xff]
    %v105 = vpack.c.bf16 %v90, %v89
    %v106 = vpack.c.bf16 %v92, %v91
    %v107 = vpack.c.bf16 %v94, %v93
    %v108 = vpack.c.bf16 %v96, %v95
    %v109 = vpack.c.bf16 %v98, %v97
    %v110 = vpack.c.bf16 %v100, %v99
    %v111 = vpack.c.bf16 %v102, %v101
    %v112 = vpack.c.bf16 %v104, %v103
    %113 = vmatprep.subr.bf16.mxu0 0
    %114 = vmatpush1.bf16.msra.mxu0 %v105
    %115 = vmatprep.subr.bf16.mxu0 0
    %116 = vmatpush1.bf16.msra.mxu0 %v106
    %117 = vmatprep.subr.bf16.mxu0 0
    %118 = vmatpush1.bf16.msra.mxu0 %v107
    %119 = vmatprep.subr.bf16.mxu0 0
    %120 = vmatpush1.bf16.msra.mxu0 %v108
    %121 = vmatprep.subr.bf16.mxu0 0
    %122 = vmatpush1.bf16.msra.mxu0 %v109
    %123 = vmatprep.subr.bf16.mxu0 0
    %124 = vmatpush1.bf16.msra.mxu0 %v110
    %125 = vmatprep.subr.bf16.mxu0 0
    %126 = vmatpush1.bf16.msra.mxu0 %v111
    %127 = vmatprep.subr.bf16.mxu0 0
    %128 = vmatpush1.bf16.msra.mxu0 %v112
    %129 = vmatprep.subr.bf16.mxu0 0
    %130 = vmatpush1.bf16.msra.mxu0 0
    %131 = vmatprep.subr.bf16.mxu0 0
    %132 = vmatpush1.bf16.msra.mxu0 0
    %133 = vmatprep.subr.bf16.mxu0 0
    %134 = vmatpush1.bf16.msra.mxu0 0
    %135 = vmatprep.subr.bf16.mxu0 0
    %136 = vmatpush1.bf16.msra.mxu0 0
    %137 = vmatprep.subr.bf16.mxu0 0
    %138 = vmatpush1.bf16.msra.mxu0 0
    %139 = vmatprep.subr.bf16.mxu0 0
    %140 = vmatpush1.bf16.msra.mxu0 0
    %141 = vmatprep.subr.bf16.mxu0 0
    %142 = vmatpush1.bf16.msra.mxu0 0
    %143 = vmatprep.subr.bf16.mxu0 0
    %144 = vmatpush1.bf16.msra.mxu0 0
    %145 = vmatprep.mubr.bf16.mxu0 0
    %146 = vmatmul.mubr.bf16.gmra.mrb[0].mxu0 %v88
    %v147 = vpop.f32.mrb[0].mxu0
    %v148 = vadd.f32 0.0, %v147
    %v149 = vpop.f32.mrb[0].mxu0
    %v150 = vpop.f32.mrb[0].mxu0
    %v151 = vpop.f32.mrb[0].mxu0
    %152 = vdwg.mxu0
    %v153 = vrot.slane %v148, 4
    %v154 = vadd.f32 %v148, %v153
    %v155 = vrot.slane %v154, 2
    %v156 = vadd.f32 %v154, %v155
    %v157 = vrot.slane %v156, 1
    %v158 = vadd.f32 %v156, %v157
    %v159 = vmul.f32 %v158, 0.125
    %v160 = vmul.f32 %v148, %v148
    %v161 = vrot.slane %v160, 4
    %v162 = vadd.f32 %v160, %v161
    %v163 = vrot.slane %v162, 2
    %v164 = vadd.f32 %v162, %v163
    %v165 = vrot.slane %v164, 1
    %v166 = vadd.f32 %v164, %v165
    %v167 = vmul.f32 %v166, 0.125
    %v168 = vmul.f32 %v159, %v159
    %v169 = vsub.f32 %v167, %v168
    %v170 = vld [vmem:[%s2] sm:$0x1]
    %v171 = vadd.f32 %v169, 1e-05
    %v172 = vrsqrt.pop %v171
    %v173 = vmul.f32 %v170, %v172
    %v174 = vld [vmem:[%s3] sm:$0x1]
    %v175 = vmul.f32 %v159, %v173
    %v176 = vsub.f32 %v174, %v175
    %v178 = vlaneseq
    %v179 = vshrl.u32 %v178, 7
    %v180 = vsub.s32 0, %v179
    %v181 = vrot.slane %v173, %v180
    %v183 = vmul.f32 %v148, %v181
    %v185 = vlaneseq
    %v186 = vshrl.u32 %v185, 7
    %v187 = vsub.s32 0, %v186
    %v188 = vrot.slane %v176, %v187
    %v190 = vadd.f32 %v183, %v188
    %v191 = vmax.f32 %v190, 0.0
    %v192 = vpack.c.bf16 %v191, %v191
    %v193 = vld [vmem:[#allocation7] sm:$0xff]
    %v194 = vld [vmem:[#allocation7 + $0x8] sm:$0xff]
    %v195 = vld [vmem:[#allocation7 + $0x10] sm:$0xff]
    %v196 = vld [vmem:[#allocation7 + $0x18] sm:$0xff]
    %v197 = vld [vmem:[#allocation7 + $0x20] sm:$0xff]
    %v198 = vld [vmem:[#allocation7 + $0x28] sm:$0xff]
    %v199 = vld [vmem:[#allocation7 + $0x30] sm:$0xff]
    %v200 = vld [vmem:[#allocation7 + $0x38] sm:$0xff]
    %v201 = vld [vmem:[#allocation7 + $0x40] sm:$0xff]
    %v202 = vld [vmem:[#allocation7 + $0x48] sm:$0xff]
    %v203 = vld [vmem:[#allocation7 + $0x50] sm:$0xff]
    %v204 = vld [vmem:[#allocation7 + $0x58] sm:$0xff]
    %v205 = vld [vmem:[#allocation7 + $0x60] sm:$0xff]
    %v206 = vld [vmem:[#allocation7 + $0x68] sm:$0xff]
    %v207 = vld [vmem:[#allocation7 + $0x70] sm:$0xff]
    %v208 = vld [vmem:[#allocation7 + $0x78] sm:$0xff]
    %v209 = vpack.c.bf16 %v194, %v193
    %v210 = vpack.c.bf16 %v196, %v195
    %v211 = vpack.c.bf16 %v198, %v197
    %v212 = vpack.c.bf16 %v200, %v199
    %v213 = vpack.c.bf16 %v202, %v201
    %v214 = vpack.c.bf16 %v204, %v203
    %v215 = vpack.c.bf16 %v206, %v205
    %v216 = vpack.c.bf16 %v208, %v207
    %217 = vmatprep.subr.bf16.mxu0 0
    %218 = vmatpush1.bf16.msra.mxu0 %v209
    %219 = vmatprep.subr.bf16.mxu0 0
    %220 = vmatpush1.bf16.msra.mxu0 %v210
    %221 = vmatprep.subr.bf16.mxu0 0
    %222 = vmatpush1.bf16.msra.mxu0 %v211
    %223 = vmatprep.subr.bf16.mxu0 0
    %224 = vmatpush1.bf16.msra.mxu0 %v212
    %225 = vmatprep.subr.bf16.mxu0 0
    %226 = vmatpush1.bf16.msra.mxu0 %v213
    %227 = vmatprep.subr.bf16.mxu0 0
    %228 = vmatpush1.bf16.msra.mxu0 %v214
    %229 = vmatprep.subr.bf16.mxu0 0
    %230 = vmatpush1.bf16.msra.mxu0 %v215
    %231 = vmatprep.subr.bf16.mxu0 0
    %232 = vmatpush1.bf16.msra.mxu0 %v216
    %233 = vmatprep.subr.bf16.mxu0 0
    %234 = vmatpush1.bf16.msra.mxu0 0
    %235 = vmatprep.subr.bf16.mxu0 0
    %236 = vmatpush1.bf16.msra.mxu0 0
    %237 = vmatprep.subr.bf16.mxu0 0
    %238 = vmatpush1.bf16.msra.mxu0 0
    %239 = vmatprep.subr.bf16.mxu0 0
    %240 = vmatpush1.bf16.msra.mxu0 0
    %241 = vmatprep.subr.bf16.mxu0 0
    %242 = vmatpush1.bf16.msra.mxu0 0
    %243 = vmatprep.subr.bf16.mxu0 0
    %244 = vmatpush1.bf16.msra.mxu0 0
    %245 = vmatprep.subr.bf16.mxu0 0
    %246 = vmatpush1.bf16.msra.mxu0 0
    %247 = vmatprep.subr.bf16.mxu0 0
    %248 = vmatpush1.bf16.msra.mxu0 0
    %249 = vmatprep.mubr.bf16.mxu0 0
    %250 = vmatmul.mubr.bf16.gmra.mrb[0].mxu0 %v192
    %v251 = vpop.f32.mrb[0].mxu0
    %v252 = vadd.f32 0.0, %v251
    %v253 = vpop.f32.mrb[0].mxu0
    %v254 = vpop.f32.mrb[0].mxu0
    %v255 = vpop.f32.mrb[0].mxu0
    %256 = vdwg.mxu0
    %v257 = vrot.slane %v252, 4
    %v258 = vadd.f32 %v252, %v257
    %v259 = vrot.slane %v258, 2
    %v260 = vadd.f32 %v258, %v259
    %v261 = vrot.slane %v260, 1
    %v262 = vadd.f32 %v260, %v261
    %v263 = vmul.f32 %v262, 0.125
    %v264 = vmul.f32 %v252, %v252
    %v265 = vrot.slane %v264, 4
    %v266 = vadd.f32 %v264, %v265
    %v267 = vrot.slane %v266, 2
    %v268 = vadd.f32 %v266, %v267
    %v269 = vrot.slane %v268, 1
    %v270 = vadd.f32 %v268, %v269
    %v271 = vmul.f32 %v270, 0.125
    %v272 = vmul.f32 %v263, %v263
    %v273 = vsub.f32 %v271, %v272
    %v274 = vld [vmem:[%s5] sm:$0x1]
    %v275 = vadd.f32 %v273, 1e-05
    %v276 = vrsqrt.pop %v275
    %v277 = vmul.f32 %v274, %v276
    %v278 = vld [vmem:[%s6] sm:$0x1]
    %v279 = vmul.f32 %v263, %v277
    %v280 = vsub.f32 %v278, %v279
    %v282 = vlaneseq
    %v283 = vshrl.u32 %v282, 7
    %v284 = vsub.s32 0, %v283
    %v285 = vrot.slane %v277, %v284
    %v287 = vmul.f32 %v252, %v285
    %v289 = vlaneseq
    %v290 = vshrl.u32 %v289, 7
    %v291 = vsub.s32 0, %v290
    %v292 = vrot.slane %v280, %v291
    %v294 = vadd.f32 %v287, %v292
    %v295 = vmax.f32 %v294, 0.0
    %v296 = vpack.c.bf16 %v295, %v295
    %v297 = vld [vmem:[#allocation8] sm:$0xff]
    %v298 = vld [vmem:[#allocation8 + $0x8] sm:$0xff]
    %v299 = vld [vmem:[#allocation8 + $0x10] sm:$0xff]
    %v300 = vld [vmem:[#allocation8 + $0x18] sm:$0xff]
    %v301 = vld [vmem:[#allocation8 + $0x20] sm:$0xff]
    %v302 = vld [vmem:[#allocation8 + $0x28] sm:$0xff]
    %v303 = vld [vmem:[#allocation8 + $0x30] sm:$0xff]
    %v304 = vld [vmem:[#allocation8 + $0x38] sm:$0xff]
    %v305 = vld [vmem:[#allocation8 + $0x40] sm:$0xff]
    %v306 = vld [vmem:[#allocation8 + $0x48] sm:$0xff]
    %v307 = vld [vmem:[#allocation8 + $0x50] sm:$0xff]
    %v308 = vld [vmem:[#allocation8 + $0x58] sm:$0xff]
    %v309 = vld [vmem:[#allocation8 + $0x60] sm:$0xff]
    %v310 = vld [vmem:[#allocation8 + $0x68] sm:$0xff]
    %v311 = vld [vmem:[#allocation8 + $0x70] sm:$0xff]
    %v312 = vld [vmem:[#allocation8 + $0x78] sm:$0xff]
    %v313 = vpack.c.bf16 %v298, %v297
    %v314 = vpack.c.bf16 %v300, %v299
    %v315 = vpack.c.bf16 %v302, %v301
    %v316 = vpack.c.bf16 %v304, %v303
    %v317 = vpack.c.bf16 %v306, %v305
    %v318 = vpack.c.bf16 %v308, %v307
    %v319 = vpack.c.bf16 %v310, %v309
    %v320 = vpack.c.bf16 %v312, %v311
    %v321 = vld [vmem:[%s8] sm:$0x1]
    %v323 = vlaneseq
    %v324 = vshrl.u32 %v323, 7
    %v325 = vsub.s32 0, %v324
    %v326 = vrot.slane %v321, %v325
    %328 = vmatprep.subr.bf16.mxu0 0
    %329 = vmatpush1.bf16.msra.mxu0 %v313
    %330 = vmatprep.subr.bf16.mxu0 0
    %331 = vmatpush1.bf16.msra.mxu0 %v314
    %332 = vmatprep.subr.bf16.mxu0 0
    %333 = vmatpush1.bf16.msra.mxu0 %v315
    %334 = vmatprep.subr.bf16.mxu0 0
    %335 = vmatpush1.bf16.msra.mxu0 %v316
    %336 = vmatprep.subr.bf16.mxu0 0
    %337 = vmatpush1.bf16.msra.mxu0 %v317
    %338 = vmatprep.subr.bf16.mxu0 0
    %339 = vmatpush1.bf16.msra.mxu0 %v318
    %340 = vmatprep.subr.bf16.mxu0 0
    %341 = vmatpush1.bf16.msra.mxu0 %v319
    %342 = vmatprep.subr.bf16.mxu0 0
    %343 = vmatpush1.bf16.msra.mxu0 %v320
    %344 = vmatprep.subr.bf16.mxu0 0
    %345 = vmatpush1.bf16.msra.mxu0 0
    %346 = vmatprep.subr.bf16.mxu0 0
    %347 = vmatpush1.bf16.msra.mxu0 0
    %348 = vmatprep.subr.bf16.mxu0 0
    %349 = vmatpush1.bf16.msra.mxu0 0
    %350 = vmatprep.subr.bf16.mxu0 0
    %351 = vmatpush1.bf16.msra.mxu0 0
    %352 = vmatprep.subr.bf16.mxu0 0
    %353 = vmatpush1.bf16.msra.mxu0 0
    %354 = vmatprep.subr.bf16.mxu0 0
    %355 = vmatpush1.bf16.msra.mxu0 0
    %356 = vmatprep.subr.bf16.mxu0 0
    %357 = vmatpush1.bf16.msra.mxu0 0
    %358 = vmatprep.subr.bf16.mxu0 0
    %359 = vmatpush1.bf16.msra.mxu0 0
    %360 = vmatprep.mubr.bf16.mxu0 0
    %361 = vmatmul.mubr.bf16.gmra.mrb[0].mxu0 %v296
    %v362 = vpop.f32.mrb[0].mxu0
    %v363 = vadd.f32 %v326, %v362
    %v364 = vpop.f32.mrb[0].mxu0
    %v365 = vpop.f32.mrb[0].mxu0
    %v366 = vpop.f32.mrb[0].mxu0
    %367 = vdwg.mxu0
    %v368 = vadd.f32 %v363, %v87
    %369 = vst [vmem:[#allocation10] sm:$0xff] %v368
    // Predicated region
    $region54: #{tpu_custom_call.1} parent=1 // pred_check
      _
    $region55: #{tpu_custom_call.1} parent=1 // pred_check_branch
      %371 = sbr.rel (0) target = $region57
    $region56: #{tpu_custom_call.1} parent=1 // pred_region
      %s373 = ssub.s32 128, 128
      %374 = vsyncadd [#allocation4], %s373
      %s376 = sshll.u32 [#allocation10], 4
      %s377 = int_to_ptr.vmem [resolvable:$true] %s376
      %379 = dma.vmem_to_hbm [thread:$0]  %s377, 128, %s9, [#allocation4]
    $region57: #{tpu_custom_call.1} parent=1 // pred_fallthru
      _
    // Predicated region
    $region58: #{tpu_custom_call.1} parent=1 // pred_check
      _
    $region59: #{tpu_custom_call.1} parent=1 // pred_check_branch
      %381 = sbr.rel (0) target = $region61
    $region60: #{tpu_custom_call.1} parent=1 // pred_region
      %382 = dma.done [#allocation4], 128
    $region61: #{tpu_custom_call.1} parent=1 // pred_fallthru
      _
    %383 = vsyncpa [#allocation3], 1
    %384 = vsyncpa [#allocation6], 1
    %385 = vsyncpa [#allocation9], 1
    %386 = vsyncpa [#allocation4], 1

</llo_original>
